<compile_context>
chip_gen: v7x
topology: tpu7x:2x2x1
jax: 0.10.0
libtpu: 0.0.40
codegen_flags: <defaults>
</compile_context>

<pallas_src>
import functools
import math

import jax
import jax.numpy as jnp
from jax.experimental import pallas as pl
from jax.experimental.pallas import tpu as pltpu

LANE = 128        # vreg lane width (last dim)
SUBLANE = 8       # vreg sublane count (second-to-last dim)
BATCH_TILE = 256  # max batch tile (fills the 256-wide MXU on v6e/v7x)


def _round_up(x, m):
    return (x + m - 1) // m * m


# ----------------------------------------------------------------------------
# Fused MLP kernel: all Linear(+bias)(+ReLU) layers in one kernel invocation.
# ----------------------------------------------------------------------------
def _fused_mlp_kernel(x_ref, w_ref, b_ref, o_ref, *, n_linear):
    # x_ref: [TB, Dp] f32    w_ref: [L, Dp, Dp] bf16    b_ref: [1, Dp] f32
    # o_ref: [TB, Dp] f32
    h = x_ref[...].astype(jnp.float32)
    for l in range(n_linear):                      # static, unrolled layer loop
        y = jnp.dot(h.astype(jnp.bfloat16), w_ref[l],
                    preferred_element_type=jnp.float32)
        if l == 0:
            y = y + b_ref[...]                     # bias only on the input layer
        if l != n_linear - 1:
            y = jnp.maximum(y, 0.0)                # ReLU on all but the last layer
        h = y
    o_ref[...] = h.astype(o_ref.dtype)             # lane-dense full-tile store


def fused_mlp(x_padded, w_stack, bias):
    """Run the whole padded MLP in a single pallas_call.

    x_padded: [B, Dp] f32  (features zero-padded to Dp, a multiple of 128)
    w_stack:  [L, Dp, Dp] bf16 (zero-padded weights, y = x @ W layout)
    bias:     [1, Dp] f32  (layer-0 bias, zero-padded)
    Returns [B, Dp] f32 (only the true output columns are meaningful).
    """
    B, Dp = x_padded.shape
    L = w_stack.shape[0]

    # Batch tiling: a single block for small B; 256-row tiles ("parallel"
    # grid axis -> megacore sharding on v7x) for large B.
    tb = min(_round_up(B, SUBLANE), BATCH_TILE)
    Bp = _round_up(B, tb)
    if Bp != B:
        x_padded = jnp.pad(x_padded, ((0, Bp - B), (0, 0)))

    out = pl.pallas_call(
        functools.partial(_fused_mlp_kernel, n_linear=L),
        out_shape=jax.ShapeDtypeStruct((Bp, Dp), jnp.float32),
        grid_spec=pltpu.PrefetchScalarGridSpec(
            num_scalar_prefetch=0,
            grid=(Bp // tb,),
            in_specs=[
                pl.BlockSpec((tb, Dp), lambda i: (i, 0)),        # activations
                pl.BlockSpec((L, Dp, Dp), lambda i: (0, 0, 0)),  # all weights, VMEM-resident
                pl.BlockSpec((1, Dp), lambda i: (0, 0)),         # layer-0 bias
            ],
            out_specs=pl.BlockSpec((tb, Dp), lambda i: (i, 0)),
        ),
        compiler_params=pltpu.CompilerParams(
            dimension_semantics=("parallel",)),
    )(x_padded, w_stack, bias)
    return out[:B]


# ----------------------------------------------------------------------------
# Parameter construction (matches MLP(input_dim, output_dim, hidden, num_layers)).
# ----------------------------------------------------------------------------
def init_mlp_params(key, input_dim, output_dim, hidden_dim, num_layers,
                    input_bias=True):
    """Stacked, zero-padded parameters for the fused kernel.

    Returns (w_stack [L, Dp, Dp] bf16, bias [1, Dp] f32, Dp, true_out_dim).
    Weights are stored as [in, out] (transpose of PyTorch) so y = x @ W.
    Zero padding keeps the padded lanes exactly zero through every ReLU.
    """
    dims = ([(input_dim, hidden_dim)]
            + [(hidden_dim, hidden_dim)] * (num_layers - 1)
            + [(hidden_dim, output_dim)])
    Dp = _round_up(max(input_dim, hidden_dim, output_dim), LANE)

    ws = []
    bias = jnp.zeros((1, Dp), jnp.float32)
    for li, (din, dout) in enumerate(dims):
        key, wk, bk = jax.random.split(key, 3)
        scale = 1.0 / math.sqrt(din)
        w = jax.random.uniform(wk, (din, dout), jnp.float32, -scale, scale)
        wp = jnp.zeros((Dp, Dp), jnp.float32).at[:din, :dout].set(w)
        ws.append(wp)
        if li == 0 and input_bias:
            b = jax.random.uniform(bk, (dout,), jnp.float32, -scale, scale)
            bias = bias.at[0, :dout].set(b)
    w_stack = jnp.stack(ws).astype(jnp.bfloat16)
    return w_stack, bias, Dp, output_dim


# ----------------------------------------------------------------------------
# GraphFlowModel: per-node MLP over gathered neighbor features.
# ----------------------------------------------------------------------------
class GraphFlowModelPallas:
    def __init__(self, num_layers, adj_list, key):
        # adj_list: {node: [data column indices of node + neighbors]} with the
        # self-loop already included (the PyTorch ctor enforces self-edges).
        # TODO(synk): networkx graph pruning / ego_graph neighborhood extraction
        # from the PyTorch constructor is host-side preprocessing, not forward
        # compute; the adjacency list is supplied directly here.
        self.adj_list = {n: jnp.asarray(ix, jnp.int32) for n, ix in adj_list.items()}
        self.models = {}
        for node, idxs in adj_list.items():
            input_dim = len(idxs)
            hidden_dim = max(10, input_dim * 2)
            key, sub = jax.random.split(key)
            self.models[node] = init_mlp_params(sub, input_dim, 1, hidden_dim,
                                                num_layers, input_bias=True)

    def _gather_and_pad(self, state, node):
        idxs = self.adj_list[node]
        w_stack, bias, Dp, out_dim = self.models[node]
        inputs = jnp.take(state, idxs, axis=1)                    # [B, input_dim]
        x = jnp.pad(inputs, ((0, 0), (0, Dp - inputs.shape[1])))  # lane-pad to Dp
        return x, w_stack, bias, out_dim

    def forward(self, state, node):
        x, w_stack, bias, _ = self._gather_and_pad(state, node)
        delta = fused_mlp(x, w_stack, bias)        # [B, Dp]
        return delta[:, 0]                         # output_dim == 1

    def forward_reference(self, state, node):
        """Pure-JAX reference with identical numerics (bf16 matmul, f32 accum)."""
        x, w_stack, bias, _ = self._gather_and_pad(state, node)
        h = x.astype(jnp.float32)
        L = w_stack.shape[0]
        for l in range(L):
            y = jnp.dot(h.astype(jnp.bfloat16), w_stack[l],
                        preferred_element_type=jnp.float32)
            if l == 0:
                y = y + bias
            if l != L - 1:
                y = jnp.maximum(y, 0.0)
            h = y
        return h[:, 0]


if __name__ == "__main__":
    # Small deterministic setup consistent with the module's forward:
    # state[:, adj_list[node]] -> MLP(input_dim, 1, max(10, 2*input_dim), L) -> [:, 0]
    batch = 8
    num_features = 6          # columns of `state` (one per data node)
    num_layers = 3

    # Fixed adjacency (self-loop first, as the ctor guarantees self-edges).
    adj_list = {
        0: [0, 1, 2],
        1: [1, 0, 3, 4],
        2: [2, 1],
        3: [3, 2, 4, 0, 5],
    }

    key = jax.random.PRNGKey(0)
    key, xk, mk = jax.random.split(key, 3)
    state = jax.random.normal(xk, (batch, num_features), jnp.float32)

    model = GraphFlowModelPallas(num_layers, adj_list, mk)

    ok = True
    for node in adj_list:
        out = jax.block_until_ready(model.forward(state, node))
        ref = jax.block_until_ready(model.forward_reference(state, node))
        assert out.shape == (batch,), out.shape
        if not jnp.allclose(out, ref, atol=1e-3, rtol=1e-3):
            ok = False
            print(f"node {node}: max abs err = "
                  f"{float(jnp.max(jnp.abs(out - ref)))}")

    if ok:
        print("KERNEL_OK")
</pallas_src>

<mosaic_0001>
module attributes {stable_mosaic.version = 11 : i64} {
  func.func @_fused_mlp_kernel(%arg0: i32, %arg1: memref<8x128xf32, #tpu.memory_space<vmem>>, %arg2: memref<4x128x128xbf16, #tpu.memory_space<vmem>>, %arg3: memref<1x128xf32, #tpu.memory_space<vmem>>, %arg4: memref<8x128xf32, #tpu.memory_space<vmem>>) attributes {dimension_semantics = [#tpu.dimension_semantics<parallel>], iteration_bounds = array<i64: 1>, scalar_prefetch = 0 : i64, scratch_operands = 0 : i64, tpu.core_type = #tpu.core_type<tc>, window_params = [{transform_indices = @transform_0, window_bounds = array<i64: 8, 128>}, {pipeline_mode = #tpu.pipeline_mode<synchronous>, transform_indices = @transform_1, window_bounds = array<i64: 4, 128, 128>}, {pipeline_mode = #tpu.pipeline_mode<synchronous>, transform_indices = @transform_2, window_bounds = array<i64: 1, 128>}, {transform_indices = @transform_3, window_bounds = array<i64: 8, 128>}]} {
    %c0 = arith.constant 0 : index
    %c0_0 = arith.constant 0 : index
    %0 = vector.load %arg1[%c0, %c0_0] : memref<8x128xf32, #tpu.memory_space<vmem>>, vector<8x128xf32>
    %1 = arith.truncf %0 : vector<8x128xf32> to vector<8x128xbf16>
    %c0_1 = arith.constant 0 : index
    %c0_2 = arith.constant 0 : index
    %c0_3 = arith.constant 0 : index
    %2 = vector.load %arg2[%c0_1, %c0_2, %c0_3] : memref<4x128x128xbf16, #tpu.memory_space<vmem>>, vector<1x128x128xbf16>
    %3 = vector.shape_cast %2 : vector<1x128x128xbf16> to vector<128x128xbf16>
    %cst = arith.constant dense<0.000000e+00> : vector<8x128xf32>
    %4 = tpu.matmul %1, %3, %cst {dimension_numbers = #tpu.dot_dimension_numbers<[1], [0], [0], [1], [0, 0, 1, 1], [], []>} : vector<8x128xbf16>, vector<128x128xbf16>, vector<8x128xf32> -> vector<8x128xf32>
    %c0_4 = arith.constant 0 : index
    %c0_5 = arith.constant 0 : index
    %5 = vector.load %arg3[%c0_4, %c0_5] : memref<1x128xf32, #tpu.memory_space<vmem>>, vector<1x128xf32>
    %6 = vector.broadcast %5 : vector<1x128xf32> to vector<8x128xf32>
    %7 = arith.addf %4, %6 : vector<8x128xf32>
    %cst_6 = arith.constant 0.000000e+00 : f32
    %8 = vector.broadcast %cst_6 : f32 to vector<8x128xf32>
    %9 = arith.maximumf %7, %8 : vector<8x128xf32>
    %10 = arith.truncf %9 : vector<8x128xf32> to vector<8x128xbf16>
    %c1 = arith.constant 1 : index
    %c0_7 = arith.constant 0 : index
    %c0_8 = arith.constant 0 : index
    %11 = vector.load %arg2[%c1, %c0_7, %c0_8] : memref<4x128x128xbf16, #tpu.memory_space<vmem>>, vector<1x128x128xbf16>
    %12 = vector.shape_cast %11 : vector<1x128x128xbf16> to vector<128x128xbf16>
    %cst_9 = arith.constant dense<0.000000e+00> : vector<8x128xf32>
    %13 = tpu.matmul %10, %12, %cst_9 {dimension_numbers = #tpu.dot_dimension_numbers<[1], [0], [0], [1], [0, 0, 1, 1], [], []>} : vector<8x128xbf16>, vector<128x128xbf16>, vector<8x128xf32> -> vector<8x128xf32>
    %cst_10 = arith.constant 0.000000e+00 : f32
    %14 = vector.broadcast %cst_10 : f32 to vector<8x128xf32>
    %15 = arith.maximumf %13, %14 : vector<8x128xf32>
    %16 = arith.truncf %15 : vector<8x128xf32> to vector<8x128xbf16>
    %c2 = arith.constant 2 : index
    %c0_11 = arith.constant 0 : index
    %c0_12 = arith.constant 0 : index
    %17 = vector.load %arg2[%c2, %c0_11, %c0_12] : memref<4x128x128xbf16, #tpu.memory_space<vmem>>, vector<1x128x128xbf16>
    %18 = vector.shape_cast %17 : vector<1x128x128xbf16> to vector<128x128xbf16>
    %cst_13 = arith.constant dense<0.000000e+00> : vector<8x128xf32>
    %19 = tpu.matmul %16, %18, %cst_13 {dimension_numbers = #tpu.dot_dimension_numbers<[1], [0], [0], [1], [0, 0, 1, 1], [], []>} : vector<8x128xbf16>, vector<128x128xbf16>, vector<8x128xf32> -> vector<8x128xf32>
    %cst_14 = arith.constant 0.000000e+00 : f32
    %20 = vector.broadcast %cst_14 : f32 to vector<8x128xf32>
    %21 = arith.maximumf %19, %20 : vector<8x128xf32>
    %22 = arith.truncf %21 : vector<8x128xf32> to vector<8x128xbf16>
    %c3 = arith.constant 3 : index
    %c0_15 = arith.constant 0 : index
    %c0_16 = arith.constant 0 : index
    %23 = vector.load %arg2[%c3, %c0_15, %c0_16] : memref<4x128x128xbf16, #tpu.memory_space<vmem>>, vector<1x128x128xbf16>
    %24 = vector.shape_cast %23 : vector<1x128x128xbf16> to vector<128x128xbf16>
    %cst_17 = arith.constant dense<0.000000e+00> : vector<8x128xf32>
    %25 = tpu.matmul %22, %24, %cst_17 {dimension_numbers = #tpu.dot_dimension_numbers<[1], [0], [0], [1], [0, 0, 1, 1], [], []>} : vector<8x128xbf16>, vector<128x128xbf16>, vector<8x128xf32> -> vector<8x128xf32>
    %c0_18 = arith.constant 0 : index
    %c0_19 = arith.constant 0 : index
    %26 = vector.load %arg4[%c0_18, %c0_19] : memref<8x128xf32, #tpu.memory_space<vmem>>, vector<8x128xf32>
    tpu.vector_store %arg4[%c0_18, %c0_19], %25 {strides = array<i32>} : memref<8x128xf32, #tpu.memory_space<vmem>>, vector<8x128xf32>,
    return
  }
  func.func @transform_0(%arg0: i32) -> (i32, i32) {
    %c0_i32 = arith.constant 0 : i32
    %c0_i32_0 = arith.constant 0 : i32
    return %arg0, %c0_i32 : i32, i32
  }
  func.func @transform_1(%arg0: i32) -> (i32, i32, i32) {
    %c0_i32 = arith.constant 0 : i32
    %c0_i32_0 = arith.constant 0 : i32
    %c0_i32_1 = arith.constant 0 : i32
    %c0_i32_2 = arith.constant 0 : i32
    return %c0_i32, %c0_i32_0, %c0_i32_1 : i32, i32, i32
  }
  func.func @transform_2(%arg0: i32) -> (i32, i32) {
    %c0_i32 = arith.constant 0 : i32
    %c0_i32_0 = arith.constant 0 : i32
    %c0_i32_1 = arith.constant 0 : i32
    return %c0_i32, %c0_i32_0 : i32, i32
  }
  func.func @transform_3(%arg0: i32) -> (i32, i32) {
    %c0_i32 = arith.constant 0 : i32
    %c0_i32_0 = arith.constant 0 : i32
    return %arg0, %c0_i32 : i32, i32
  }
}

</mosaic_0001>

<llo_original>
// kernel: tpu_custom_call.1
$region0: #{tpu_custom_call.1}
  #allocation0 [shape = 'u32[]', space=smem, size = 0x4, offset = 0x4, fixed_abs, tag = 'smem constant byte address 0x4 - core index']
  #allocation1 [shape = 'u32[144,128]{1,0:T(1,128)}', space=vmem, size = 0x12000, scoped, tag = 'internal scratch']
  %s0 = inlined_call_operand.hbm [shape: f32[8,128], index: 0, kind: input, shape index: {}]
  %s1 = inlined_call_operand.hbm [shape: bf16[4,128,128], index: 1, kind: input, shape index: {}]
  %s2 = inlined_call_operand.vmem [shape: f32[1,128], index: 2, kind: input, shape index: {}]
  %s3 = inlined_call_operand.hbm [shape: f32[8,128], index: 3, kind: output, shape index: {}]
  %s4 = sld [smem:[#allocation0]]
  $region30: #{tpu_custom_call.1} parent=0
    _
  %s6 = ssub.s32 1, %s4
  %s7 = scalar_select 0, %s6, %s4
  $region1: #{tpu_custom_call.1} parent=0
    #allocation2 [shape = 'u8[4096]{0}', space=vmem, size = 0x1000, scoped, tag = 'input window, operand 0, single buffered']
    #allocation3 [shape = 's32[1]{0}', space=sflag, size = 0x4, scoped, tag = 'scoped memory for tpu_custom_call.1']
    #allocation4 [shape = 's32[1]{0}', space=sflag, size = 0x4, scoped, tag = 'scoped memory for tpu_custom_call.1']
    #allocation5 [shape = 'u8[131072]{0}', space=vmem, size = 0x20000, scoped, tag = 'input window, operand 1, single buffered']
    #allocation6 [shape = 's32[1]{0}', space=sflag, size = 0x4, scoped, tag = 'scoped memory for tpu_custom_call.1']
    #allocation7 [shape = 'u8[4096]{0}', space=vmem, size = 0x1000, scoped, tag = 'output window, operand 0, single buffered']
    %8 = vsyncpa [#allocation3], 0
    %9 = vsyncpa [#allocation6], 0
    %10 = vsyncpa [#allocation4], 0
    // Predicated region
    $region2: #{tpu_custom_call.1} parent=1 // pred_check
      _
    $region3: #{tpu_custom_call.1} parent=1 // pred_check_branch
      %12 = sbr.rel (0) target = $region5
    $region4: #{tpu_custom_call.1} parent=1 // pred_region
      %s14 = ssub.s32 128, 128
      %15 = vsyncadd [#allocation3], %s14
      %s17 = sshll.u32 [#allocation2], 4
      %s18 = int_to_ptr.vmem [resolvable:$true] %s17
      %20 = dma.hbm_to_vmem [thread:$0]  %s0, 128, %s18, [#allocation3]
    $region5: #{tpu_custom_call.1} parent=1 // pred_fallthru
      _
    // Predicated region
    $region6: #{tpu_custom_call.1} parent=1 // pred_check
      _
    $region7: #{tpu_custom_call.1} parent=1 // pred_check_branch
      %22 = sbr.rel (0) target = $region9
    $region8: #{tpu_custom_call.1} parent=1 // pred_region
      %s24 = ssub.s32 4096, 4096
      %25 = vsyncadd [#allocation6], %s24
      %s26 = sshll.u32 [#allocation5], 4
      %s27 = int_to_ptr.vmem [resolvable:$true] %s26
      %32 = dma.hbm_to_vmem [thread:$0]  %s1, 4096, %s27, [#allocation6], 64, 64, 4
    $region9: #{tpu_custom_call.1} parent=1 // pred_fallthru
      _
    // Predicated region
    $region10: #{tpu_custom_call.1} parent=1 // pred_check
      _
    $region11: #{tpu_custom_call.1} parent=1 // pred_check_branch
      %34 = sbr.rel (0) target = $region13
    $region12: #{tpu_custom_call.1} parent=1 // pred_region
      _
    $region13: #{tpu_custom_call.1} parent=1 // pred_fallthru
      _
    // Predicated region
    $region14: #{tpu_custom_call.1} parent=1 // pred_check
      _
    $region15: #{tpu_custom_call.1} parent=1 // pred_check_branch
      %36 = sbr.rel (0) target = $region17
    $region16: #{tpu_custom_call.1} parent=1 // pred_region
      %37 = dma.done [#allocation3], 128
    $region17: #{tpu_custom_call.1} parent=1 // pred_fallthru
      _
    // Predicated region
    $region18: #{tpu_custom_call.1} parent=1 // pred_check
      _
    $region19: #{tpu_custom_call.1} parent=1 // pred_check_branch
      %39 = sbr.rel (0) target = $region21
    $region20: #{tpu_custom_call.1} parent=1 // pred_region
      %40 = dma.done [#allocation6], 4096
    $region21: #{tpu_custom_call.1} parent=1 // pred_fallthru
      _
    %v42 = vld [vmem:[#allocation2] sm:$0xff]
    %v43 = vpack.c.bf16 %v42, %v42
    %v44 = vld [vmem:[#allocation5] sm:$0xf]
    %v45 = vld [vmem:[#allocation5 + $0x4] sm:$0xf]
    %v46 = vld [vmem:[#allocation5 + $0x8] sm:$0xf]
    %v47 = vld [vmem:[#allocation5 + $0xc] sm:$0xf]
    %v48 = vld [vmem:[#allocation5 + $0x10] sm:$0xf]
    %v49 = vld [vmem:[#allocation5 + $0x14] sm:$0xf]
    %v50 = vld [vmem:[#allocation5 + $0x18] sm:$0xf]
    %v51 = vld [vmem:[#allocation5 + $0x1c] sm:$0xf]
    %v52 = vld [vmem:[#allocation5 + $0x20] sm:$0xf]
    %v53 = vld [vmem:[#allocation5 + $0x24] sm:$0xf]
    %v54 = vld [vmem:[#allocation5 + $0x28] sm:$0xf]
    %v55 = vld [vmem:[#allocation5 + $0x2c] sm:$0xf]
    %v56 = vld [vmem:[#allocation5 + $0x30] sm:$0xf]
    %v57 = vld [vmem:[#allocation5 + $0x34] sm:$0xf]
    %v58 = vld [vmem:[#allocation5 + $0x38] sm:$0xf]
    %v59 = vld [vmem:[#allocation5 + $0x3c] sm:$0xf]
    %v60 = vld [vmem:[%s2] sm:$0x1]
    %v62 = vlaneseq
    %v63 = vshrl.u32 %v62, 7
    %v64 = vsub.s32 0, %v63
    %v65 = vrot.slane %v60, %v64
    %v83 = vunpack.c.l.b16 %v44
    %v84 = vunpack.c.l.b16 %v45
    %v85 = vunpack.c.l.b16 %v46
    %v86 = vunpack.c.l.b16 %v47
    %v87 = vunpack.c.l.b16 %v48
    %v88 = vunpack.c.l.b16 %v49
    %v89 = vunpack.c.l.b16 %v50
    %v90 = vunpack.c.l.b16 %v51
    %v91 = vunpack.c.l.b16 %v52
    %v92 = vunpack.c.l.b16 %v53
    %v93 = vunpack.c.l.b16 %v54
    %v94 = vunpack.c.l.b16 %v55
    %v95 = vunpack.c.l.b16 %v56
    %v96 = vunpack.c.l.b16 %v57
    %v97 = vunpack.c.l.b16 %v58
    %v98 = vunpack.c.l.b16 %v59
    %v99 = vpack.c.b16 %v84, %v83
    %v100 = vpack.c.b16 %v86, %v85
    %v101 = vpack.c.b16 %v88, %v87
    %v102 = vpack.c.b16 %v90, %v89
    %v103 = vpack.c.b16 %v92, %v91
    %v104 = vpack.c.b16 %v94, %v93
    %v105 = vpack.c.b16 %v96, %v95
    %v106 = vpack.c.b16 %v98, %v97
    %115 = vmatprep.subr.bf16.mxu0 0
    %116 = vmatpush1.bf16.msra.mxu0 %v99
    %117 = vmatprep.subr.bf16.mxu0 0
    %118 = vmatpush1.bf16.msra.mxu0 %v100
    %119 = vmatprep.subr.bf16.mxu0 0
    %120 = vmatpush1.bf16.msra.mxu0 %v101
    %121 = vmatprep.subr.bf16.mxu0 0
    %122 = vmatpush1.bf16.msra.mxu0 %v102
    %123 = vmatprep.subr.bf16.mxu0 0
    %124 = vmatpush1.bf16.msra.mxu0 %v103
    %125 = vmatprep.subr.bf16.mxu0 0
    %126 = vmatpush1.bf16.msra.mxu0 %v104
    %127 = vmatprep.subr.bf16.mxu0 0
    %128 = vmatpush1.bf16.msra.mxu0 %v105
    %129 = vmatprep.subr.bf16.mxu0 0
    %130 = vmatpush1.bf16.msra.mxu0 %v106
    %131 = vmatprep.subr.bf16.mxu0 0
    %132 = vmatpush1.bf16.msra.mxu0 0
    %133 = vmatprep.subr.bf16.mxu0 0
    %134 = vmatpush1.bf16.msra.mxu0 0
    %135 = vmatprep.subr.bf16.mxu0 0
    %136 = vmatpush1.bf16.msra.mxu0 0
    %137 = vmatprep.subr.bf16.mxu0 0
    %138 = vmatpush1.bf16.msra.mxu0 0
    %139 = vmatprep.subr.bf16.mxu0 0
    %140 = vmatpush1.bf16.msra.mxu0 0
    %141 = vmatprep.subr.bf16.mxu0 0
    %142 = vmatpush1.bf16.msra.mxu0 0
    %143 = vmatprep.subr.bf16.mxu0 0
    %144 = vmatpush1.bf16.msra.mxu0 0
    %145 = vmatprep.subr.bf16.mxu0 0
    %146 = vmatpush1.bf16.msra.mxu0 0
    %147 = vmatprep.mubr.bf16.mxu0 0
    %148 = vmatmul.mubr.bf16.gmra.mrb[0].mxu0 %v43
    %v149 = vpop.f32.mrb[0].mxu0
    %v150 = vadd.f32 %v65, %v149
    %v151 = vpop.f32.mrb[0].mxu0
    %v152 = vpop.f32.mrb[0].mxu0
    %v153 = vpop.f32.mrb[0].mxu0
    %154 = vdwg.mxu0
    %v155 = vmax.f32 %v150, 0.0
    %v156 = vpack.c.bf16 %v155, %v155
    %s157 = scalar_lea.vmem [#allocation5], 64
    %v158 = vld [vmem:[%s157] sm:$0xf]
    %v159 = vld [vmem:[%s157 + $0x4] sm:$0xf]
    %v160 = vld [vmem:[%s157 + $0x8] sm:$0xf]
    %v161 = vld [vmem:[%s157 + $0xc] sm:$0xf]
    %v162 = vld [vmem:[%s157 + $0x10] sm:$0xf]
    %v163 = vld [vmem:[%s157 + $0x14] sm:$0xf]
    %v164 = vld [vmem:[%s157 + $0x18] sm:$0xf]
    %v165 = vld [vmem:[%s157 + $0x1c] sm:$0xf]
    %v166 = vld [vmem:[%s157 + $0x20] sm:$0xf]
    %v167 = vld [vmem:[%s157 + $0x24] sm:$0xf]
    %v168 = vld [vmem:[%s157 + $0x28] sm:$0xf]
    %v169 = vld [vmem:[%s157 + $0x2c] sm:$0xf]
    %v170 = vld [vmem:[%s157 + $0x30] sm:$0xf]
    %v171 = vld [vmem:[%s157 + $0x34] sm:$0xf]
    %v172 = vld [vmem:[%s157 + $0x38] sm:$0xf]
    %v173 = vld [vmem:[%s157 + $0x3c] sm:$0xf]
    %v190 = vunpack.c.l.b16 %v158
    %v191 = vunpack.c.l.b16 %v159
    %v192 = vunpack.c.l.b16 %v160
    %v193 = vunpack.c.l.b16 %v161
    %v194 = vunpack.c.l.b16 %v162
    %v195 = vunpack.c.l.b16 %v163
    %v196 = vunpack.c.l.b16 %v164
    %v197 = vunpack.c.l.b16 %v165
    %v198 = vunpack.c.l.b16 %v166
    %v199 = vunpack.c.l.b16 %v167
    %v200 = vunpack.c.l.b16 %v168
    %v201 = vunpack.c.l.b16 %v169
    %v202 = vunpack.c.l.b16 %v170
    %v203 = vunpack.c.l.b16 %v171
    %v204 = vunpack.c.l.b16 %v172
    %v205 = vunpack.c.l.b16 %v173
    %v206 = vpack.c.b16 %v191, %v190
    %v207 = vpack.c.b16 %v193, %v192
    %v208 = vpack.c.b16 %v195, %v194
    %v209 = vpack.c.b16 %v197, %v196
    %v210 = vpack.c.b16 %v199, %v198
    %v211 = vpack.c.b16 %v201, %v200
    %v212 = vpack.c.b16 %v203, %v202
    %v213 = vpack.c.b16 %v205, %v204
    %222 = vmatprep.subr.bf16.mxu0 0
    %223 = vmatpush1.bf16.msra.mxu0 %v206
    %224 = vmatprep.subr.bf16.mxu0 0
    %225 = vmatpush1.bf16.msra.mxu0 %v207
    %226 = vmatprep.subr.bf16.mxu0 0
    %227 = vmatpush1.bf16.msra.mxu0 %v208
    %228 = vmatprep.subr.bf16.mxu0 0
    %229 = vmatpush1.bf16.msra.mxu0 %v209
    %230 = vmatprep.subr.bf16.mxu0 0
    %231 = vmatpush1.bf16.msra.mxu0 %v210
    %232 = vmatprep.subr.bf16.mxu0 0
    %233 = vmatpush1.bf16.msra.mxu0 %v211
    %234 = vmatprep.subr.bf16.mxu0 0
    %235 = vmatpush1.bf16.msra.mxu0 %v212
    %236 = vmatprep.subr.bf16.mxu0 0
    %237 = vmatpush1.bf16.msra.mxu0 %v213
    %238 = vmatprep.subr.bf16.mxu0 0
    %239 = vmatpush1.bf16.msra.mxu0 0
    %240 = vmatprep.subr.bf16.mxu0 0
    %241 = vmatpush1.bf16.msra.mxu0 0
    %242 = vmatprep.subr.bf16.mxu0 0
    %243 = vmatpush1.bf16.msra.mxu0 0
    %244 = vmatprep.subr.bf16.mxu0 0
    %245 = vmatpush1.bf16.msra.mxu0 0
    %246 = vmatprep.subr.bf16.mxu0 0
    %247 = vmatpush1.bf16.msra.mxu0 0
    %248 = vmatprep.subr.bf16.mxu0 0
    %249 = vmatpush1.bf16.msra.mxu0 0
    %250 = vmatprep.subr.bf16.mxu0 0
    %251 = vmatpush1.bf16.msra.mxu0 0
    %252 = vmatprep.subr.bf16.mxu0 0
    %253 = vmatpush1.bf16.msra.mxu0 0
    %254 = vmatprep.mubr.bf16.mxu0 0
    %255 = vmatmul.mubr.bf16.gmra.mrb[0].mxu0 %v156
    %v256 = vpop.f32.mrb[0].mxu0
    %v257 = vadd.f32 0.0, %v256
    %v258 = vpop.f32.mrb[0].mxu0
    %v259 = vpop.f32.mrb[0].mxu0
    %v260 = vpop.f32.mrb[0].mxu0
    %261 = vdwg.mxu0
    %v262 = vmax.f32 %v257, 0.0
    %v263 = vpack.c.bf16 %v262, %v262
    %s264 = scalar_lea.vmem [#allocation5], 128
    %v265 = vld [vmem:[%s264] sm:$0xf]
    %v266 = vld [vmem:[%s264 + $0x4] sm:$0xf]
    %v267 = vld [vmem:[%s264 + $0x8] sm:$0xf]
    %v268 = vld [vmem:[%s264 + $0xc] sm:$0xf]
    %v269 = vld [vmem:[%s264 + $0x10] sm:$0xf]
    %v270 = vld [vmem:[%s264 + $0x14] sm:$0xf]
    %v271 = vld [vmem:[%s264 + $0x18] sm:$0xf]
    %v272 = vld [vmem:[%s264 + $0x1c] sm:$0xf]
    %v273 = vld [vmem:[%s264 + $0x20] sm:$0xf]
    %v274 = vld [vmem:[%s264 + $0x24] sm:$0xf]
    %v275 = vld [vmem:[%s264 + $0x28] sm:$0xf]
    %v276 = vld [vmem:[%s264 + $0x2c] sm:$0xf]
    %v277 = vld [vmem:[%s264 + $0x30] sm:$0xf]
    %v278 = vld [vmem:[%s264 + $0x34] sm:$0xf]
    %v279 = vld [vmem:[%s264 + $0x38] sm:$0xf]
    %v280 = vld [vmem:[%s264 + $0x3c] sm:$0xf]
    %v297 = vunpack.c.l.b16 %v265
    %v298 = vunpack.c.l.b16 %v266
    %v299 = vunpack.c.l.b16 %v267
    %v300 = vunpack.c.l.b16 %v268
    %v301 = vunpack.c.l.b16 %v269
    %v302 = vunpack.c.l.b16 %v270
    %v303 = vunpack.c.l.b16 %v271
    %v304 = vunpack.c.l.b16 %v272
    %v305 = vunpack.c.l.b16 %v273
    %v306 = vunpack.c.l.b16 %v274
    %v307 = vunpack.c.l.b16 %v275
    %v308 = vunpack.c.l.b16 %v276
    %v309 = vunpack.c.l.b16 %v277
    %v310 = vunpack.c.l.b16 %v278
    %v311 = vunpack.c.l.b16 %v279
    %v312 = vunpack.c.l.b16 %v280
    %v313 = vpack.c.b16 %v298, %v297
    %v314 = vpack.c.b16 %v300, %v299
    %v315 = vpack.c.b16 %v302, %v301
    %v316 = vpack.c.b16 %v304, %v303
    %v317 = vpack.c.b16 %v306, %v305
    %v318 = vpack.c.b16 %v308, %v307
    %v319 = vpack.c.b16 %v310, %v309
    %v320 = vpack.c.b16 %v312, %v311
    %329 = vmatprep.subr.bf16.mxu0 0
    %330 = vmatpush1.bf16.msra.mxu0 %v313
    %331 = vmatprep.subr.bf16.mxu0 0
    %332 = vmatpush1.bf16.msra.mxu0 %v314
    %333 = vmatprep.subr.bf16.mxu0 0
    %334 = vmatpush1.bf16.msra.mxu0 %v315
    %335 = vmatprep.subr.bf16.mxu0 0
    %336 = vmatpush1.bf16.msra.mxu0 %v316
    %337 = vmatprep.subr.bf16.mxu0 0
    %338 = vmatpush1.bf16.msra.mxu0 %v317
    %339 = vmatprep.subr.bf16.mxu0 0
    %340 = vmatpush1.bf16.msra.mxu0 %v318
    %341 = vmatprep.subr.bf16.mxu0 0
    %342 = vmatpush1.bf16.msra.mxu0 %v319
    %343 = vmatprep.subr.bf16.mxu0 0
    %344 = vmatpush1.bf16.msra.mxu0 %v320
    %345 = vmatprep.subr.bf16.mxu0 0
    %346 = vmatpush1.bf16.msra.mxu0 0
    %347 = vmatprep.subr.bf16.mxu0 0
    %348 = vmatpush1.bf16.msra.mxu0 0
    %349 = vmatprep.subr.bf16.mxu0 0
    %350 = vmatpush1.bf16.msra.mxu0 0
    %351 = vmatprep.subr.bf16.mxu0 0
    %352 = vmatpush1.bf16.msra.mxu0 0
    %353 = vmatprep.subr.bf16.mxu0 0
    %354 = vmatpush1.bf16.msra.mxu0 0
    %355 = vmatprep.subr.bf16.mxu0 0
    %356 = vmatpush1.bf16.msra.mxu0 0
    %357 = vmatprep.subr.bf16.mxu0 0
    %358 = vmatpush1.bf16.msra.mxu0 0
    %359 = vmatprep.subr.bf16.mxu0 0
    %360 = vmatpush1.bf16.msra.mxu0 0
    %361 = vmatprep.mubr.bf16.mxu0 0
    %362 = vmatmul.mubr.bf16.gmra.mrb[0].mxu0 %v263
    %v363 = vpop.f32.mrb[0].mxu0
    %v364 = vadd.f32 0.0, %v363
    %v365 = vpop.f32.mrb[0].mxu0
    %v366 = vpop.f32.mrb[0].mxu0
    %v367 = vpop.f32.mrb[0].mxu0
    %368 = vdwg.mxu0
    %v369 = vmax.f32 %v364, 0.0
    %v370 = vpack.c.bf16 %v369, %v369
    %s371 = scalar_lea.vmem [#allocation5], 192
    %v372 = vld [vmem:[%s371] sm:$0xf]
    %v373 = vld [vmem:[%s371 + $0x4] sm:$0xf]
    %v374 = vld [vmem:[%s371 + $0x8] sm:$0xf]
    %v375 = vld [vmem:[%s371 + $0xc] sm:$0xf]
    %v376 = vld [vmem:[%s371 + $0x10] sm:$0xf]
    %v377 = vld [vmem:[%s371 + $0x14] sm:$0xf]
    %v378 = vld [vmem:[%s371 + $0x18] sm:$0xf]
    %v379 = vld [vmem:[%s371 + $0x1c] sm:$0xf]
    %v380 = vld [vmem:[%s371 + $0x20] sm:$0xf]
    %v381 = vld [vmem:[%s371 + $0x24] sm:$0xf]
    %v382 = vld [vmem:[%s371 + $0x28] sm:$0xf]
    %v383 = vld [vmem:[%s371 + $0x2c] sm:$0xf]
    %v384 = vld [vmem:[%s371 + $0x30] sm:$0xf]
    %v385 = vld [vmem:[%s371 + $0x34] sm:$0xf]
    %v386 = vld [vmem:[%s371 + $0x38] sm:$0xf]
    %v387 = vld [vmem:[%s371 + $0x3c] sm:$0xf]
    %v404 = vunpack.c.l.b16 %v372
    %v405 = vunpack.c.l.b16 %v373
    %v406 = vunpack.c.l.b16 %v374
    %v407 = vunpack.c.l.b16 %v375
    %v408 = vunpack.c.l.b16 %v376
    %v409 = vunpack.c.l.b16 %v377
    %v410 = vunpack.c.l.b16 %v378
    %v411 = vunpack.c.l.b16 %v379
    %v412 = vunpack.c.l.b16 %v380
    %v413 = vunpack.c.l.b16 %v381
    %v414 = vunpack.c.l.b16 %v382
    %v415 = vunpack.c.l.b16 %v383
    %v416 = vunpack.c.l.b16 %v384
    %v417 = vunpack.c.l.b16 %v385
    %v418 = vunpack.c.l.b16 %v386
    %v419 = vunpack.c.l.b16 %v387
    %v420 = vpack.c.b16 %v405, %v404
    %v421 = vpack.c.b16 %v407, %v406
    %v422 = vpack.c.b16 %v409, %v408
    %v423 = vpack.c.b16 %v411, %v410
    %v424 = vpack.c.b16 %v413, %v412
    %v425 = vpack.c.b16 %v415, %v414
    %v426 = vpack.c.b16 %v417, %v416
    %v427 = vpack.c.b16 %v419, %v418
    %436 = vmatprep.subr.bf16.mxu0 0
    %437 = vmatpush1.bf16.msra.mxu0 %v420
    %438 = vmatprep.subr.bf16.mxu0 0
    %439 = vmatpush1.bf16.msra.mxu0 %v421
    %440 = vmatprep.subr.bf16.mxu0 0
    %441 = vmatpush1.bf16.msra.mxu0 %v422
    %442 = vmatprep.subr.bf16.mxu0 0
    %443 = vmatpush1.bf16.msra.mxu0 %v423
    %444 = vmatprep.subr.bf16.mxu0 0
    %445 = vmatpush1.bf16.msra.mxu0 %v424
    %446 = vmatprep.subr.bf16.mxu0 0
    %447 = vmatpush1.bf16.msra.mxu0 %v425
    %448 = vmatprep.subr.bf16.mxu0 0
    %449 = vmatpush1.bf16.msra.mxu0 %v426
    %450 = vmatprep.subr.bf16.mxu0 0
    %451 = vmatpush1.bf16.msra.mxu0 %v427
    %452 = vmatprep.subr.bf16.mxu0 0
    %453 = vmatpush1.bf16.msra.mxu0 0
    %454 = vmatprep.subr.bf16.mxu0 0
    %455 = vmatpush1.bf16.msra.mxu0 0
    %456 = vmatprep.subr.bf16.mxu0 0
    %457 = vmatpush1.bf16.msra.mxu0 0
    %458 = vmatprep.subr.bf16.mxu0 0
    %459 = vmatpush1.bf16.msra.mxu0 0
    %460 = vmatprep.subr.bf16.mxu0 0
    %461 = vmatpush1.bf16.msra.mxu0 0
    %462 = vmatprep.subr.bf16.mxu0 0
    %463 = vmatpush1.bf16.msra.mxu0 0
    %464 = vmatprep.subr.bf16.mxu0 0
    %465 = vmatpush1.bf16.msra.mxu0 0
    %466 = vmatprep.subr.bf16.mxu0 0
    %467 = vmatpush1.bf16.msra.mxu0 0
    %468 = vmatprep.mubr.bf16.mxu0 0
    %469 = vmatmul.mubr.bf16.gmra.mrb[0].mxu0 %v370
    %v470 = vpop.f32.mrb[0].mxu0
    %v471 = vadd.f32 0.0, %v470
    %v472 = vpop.f32.mrb[0].mxu0
    %v473 = vpop.f32.mrb[0].mxu0
    %v474 = vpop.f32.mrb[0].mxu0
    %475 = vdwg.mxu0
    %476 = vst [vmem:[#allocation7] sm:$0xff] %v471
    // Predicated region
    $region22: #{tpu_custom_call.1} parent=1 // pred_check
      _
    $region23: #{tpu_custom_call.1} parent=1 // pred_check_branch
      %478 = sbr.rel (0) target = $region25
    $region24: #{tpu_custom_call.1} parent=1 // pred_region
      %s480 = ssub.s32 128, 128
      %481 = vsyncadd [#allocation4], %s480
      %s483 = sshll.u32 [#allocation7], 4
      %s484 = int_to_ptr.vmem [resolvable:$true] %s483
      %486 = dma.vmem_to_hbm [thread:$0]  %s484, 128, %s3, [#allocation4]
    $region25: #{tpu_custom_call.1} parent=1 // pred_fallthru
      _
    // Predicated region
    $region26: #{tpu_custom_call.1} parent=1 // pred_check
      _
    $region27: #{tpu_custom_call.1} parent=1 // pred_check_branch
      %488 = sbr.rel (0) target = $region29
    $region28: #{tpu_custom_call.1} parent=1 // pred_region
      %489 = dma.done [#allocation4], 128
    $region29: #{tpu_custom_call.1} parent=1 // pred_fallthru
      _
    %490 = vsyncpa [#allocation3], 1
    %491 = vsyncpa [#allocation6], 1
    %492 = vsyncpa [#allocation4], 1

</llo_original>
